<compile_context>
chip_gen: v6e
topology: v6e:2x2x1
jax: 0.10.0
libtpu: 0.0.40
codegen_flags: <defaults>
</compile_context>

<pallas_src>
import numpy as np
import jax
import jax.numpy as jnp
from jax.experimental import pallas as pl
from jax.experimental.pallas import tpu as pltpu


def _dft_cos_sin(m: int):
    """DFT cos/sin matrices of size (m, m), built in float64 (rounded later)."""
    idx = np.arange(m, dtype=np.float64)
    ang = 2.0 * np.pi * np.outer(idx, idx) / m
    return np.cos(ang), np.sin(ang)


def _fnet_kernel(x_ref, w1_ref, cn_ref, sn_ref, o_ref):
    # x_ref: (TB, N, D);  w1_ref: (D, 2D) = [C_D | S_D];  cn/sn: (N, N)
    tb, n, d = x_ref.shape

    # Stage 1: FFT over the hidden axis — one wide bf16 MXU matmul, f32 accum.
    # (TB*N, D) @ (D, 2D): batches flattened into the MXU M dimension.
    x = x_ref[...].reshape(tb * n, d).astype(jnp.bfloat16)
    y = jnp.dot(x, w1_ref[...], preferred_element_type=jnp.float32)  # (TB*N, 2D)

    # Load constant tables once, reuse across the unrolled batch loop.
    cn = cn_ref[...]
    sn = sn_ref[...]

    # Stage 2: FFT over the sequence axis, statically unrolled per batch.
    # y[:, :d] = x @ C_D (= Re of stage 1);  y[:, d:] = x @ S_D (= -Im).
    for b in range(tb):
        re1 = y[b * n:(b + 1) * n, :d].astype(jnp.bfloat16)
        xs1 = y[b * n:(b + 1) * n, d:].astype(jnp.bfloat16)
        out_b = (jnp.dot(cn, re1, preferred_element_type=jnp.float32)
                 - jnp.dot(sn, xs1, preferred_element_type=jnp.float32))
        o_ref[b] = out_b.astype(o_ref.dtype)


def fnet_block(x: jax.Array, *, block_b: int | None = None) -> jax.Array:
    """Pallas equivalent of FNetBlock.forward for real x of shape (B, N, D)."""
    B, N, D = x.shape

    # DFT tables in float64, rounded once to bf16 (MXU-native dtype).
    cn64, sn64 = _dft_cos_sin(N)
    cd64, sd64 = _dft_cos_sin(D)
    w1 = jnp.asarray(np.concatenate([cd64, sd64], axis=1), dtype=jnp.bfloat16)  # (D, 2D)
    cn = jnp.asarray(cn64, dtype=jnp.bfloat16)                                  # (N, N)
    sn = jnp.asarray(sn64, dtype=jnp.bfloat16)                                  # (N, N)

    # Batches per grid step: fill ~256 MXU rows in stage 1, exact partition of B.
    if block_b is None:
        block_b = min(B, max(1, 256 // max(1, N)))
        while B % block_b:
            block_b -= 1
    grid_b = B // block_b

    itemsize = x.dtype.itemsize
    # Stage 1: 2*(B*N)*D*(2D) flops; stage 2: 2*B*(2*N*N*D) flops.
    cost = pl.CostEstimate(
        flops=4 * B * N * D * (D + N),
        transcendentals=0,
        bytes_accessed=2 * B * N * D * itemsize + 2 * (2 * D * D + 2 * N * N),
    )

    # VMEM budget: x/out tiles (double-buffered) + bf16 tables (<=2 buffers)
    # + stage-1 f32 result and bf16 re/im copies, with 2x slack.  Capped at
    # 64 MiB so the request is valid on v7x as well as v5e/v6e.
    vmem_bytes = (
        2 * 2 * block_b * N * D * itemsize
        + 2 * 2 * (2 * D * D + 2 * N * N)
        + 3 * block_b * N * 2 * D * 4
    )
    vmem_limit = int(min(64 << 20, max(32 << 20, 2 * vmem_bytes)))

    def build(single_buffer_weights: bool):
        if single_buffer_weights:
            # Constant index_map => double-buffering the tables is pure waste.
            def wspec(shape):
                return pl.BlockSpec(shape, lambda b: (0, 0),
                                    pipeline_mode=pl.Buffered(1))
        else:
            def wspec(shape):
                return pl.BlockSpec(shape, lambda b: (0, 0))

        return pl.pallas_call(
            _fnet_kernel,
            out_shape=jax.ShapeDtypeStruct((B, N, D), x.dtype),
            grid_spec=pltpu.PrefetchScalarGridSpec(
                num_scalar_prefetch=0,
                grid=(grid_b,),
                in_specs=[
                    pl.BlockSpec((block_b, N, D), lambda b: (b, 0, 0)),  # x tile
                    wspec((D, 2 * D)),   # [C_D | S_D]
                    wspec((N, N)),       # C_N
                    wspec((N, N)),       # S_N
                ],
                out_specs=pl.BlockSpec((block_b, N, D), lambda b: (b, 0, 0)),
            ),
            compiler_params=pltpu.CompilerParams(
                dimension_semantics=("parallel",),   # batch axis splits across TCs
                vmem_limit_bytes=vmem_limit,
            ),
            cost_estimate=cost,
        )

    # TODO(synk): for production shapes, pad D up to a multiple of 128 in this
    # wrapper for lane-dense output stores (test shapes left exact here).
    try:
        return build(single_buffer_weights=True)(x, w1, cn, sn)
    except Exception:
        # Fallback for JAX versions where pipeline_mode=pl.Buffered(1) is not
        # accepted on pallas_call in_specs.
        return build(single_buffer_weights=False)(x, w1, cn, sn)


if __name__ == "__main__":
    key = jax.random.PRNGKey(0)
    B, N, D = 2, 8, 32
    x = jax.random.normal(key, (B, N, D), dtype=jnp.float32)

    out = fnet_block(x)
    out = jax.block_until_ready(out)
    assert out.shape == (B, N, D)

    # Reference: torch.fft.fft(torch.fft.fft(x, dim=-1), dim=-2).real
    ref = jnp.real(jnp.fft.fft(jnp.fft.fft(x, axis=-1), axis=-2)).astype(jnp.float32)

    # bf16 MXU inputs with f32 accumulation: validate against a relative-error
    # budget appropriate for bf16 DFT tables.
    max_err = float(jnp.max(jnp.abs(out.astype(jnp.float32) - ref)))
    scale = float(jnp.max(jnp.abs(ref)))
    assert max_err <= 5e-2 * scale + 1e-1, (max_err, scale)

    print("KERNEL_OK")
</pallas_src>

<mosaic_0001>
module attributes {stable_mosaic.version = 11 : i64} {
  func.func @_fnet_kernel(%arg0: i32, %arg1: memref<2x8x32xf32, #tpu.memory_space<vmem>>, %arg2: memref<32x64xbf16, #tpu.memory_space<vmem>>, %arg3: memref<8x8xbf16, #tpu.memory_space<vmem>>, %arg4: memref<8x8xbf16, #tpu.memory_space<vmem>>, %arg5: memref<2x8x32xf32, #tpu.memory_space<vmem>>) attributes {dimension_semantics = [#tpu.dimension_semantics<parallel>], iteration_bounds = array<i64: 1>, scalar_prefetch = 0 : i64, scratch_operands = 0 : i64, tpu.core_type = #tpu.core_type<tc>, window_params = [{transform_indices = @transform_0, window_bounds = array<i64: 2, 8, 32>}, {pipeline_mode = #tpu.pipeline_mode<synchronous>, transform_indices = @transform_1, window_bounds = array<i64: 32, 64>}, {pipeline_mode = #tpu.pipeline_mode<synchronous>, transform_indices = @transform_2, window_bounds = array<i64: 8, 8>}, {pipeline_mode = #tpu.pipeline_mode<synchronous>, transform_indices = @transform_3, window_bounds = array<i64: 8, 8>}, {transform_indices = @transform_4, window_bounds = array<i64: 2, 8, 32>}]} {
    %c0 = arith.constant 0 : index
    %c0_0 = arith.constant 0 : index
    %c0_1 = arith.constant 0 : index
    %0 = vector.load %arg1[%c0, %c0_0, %c0_1] : memref<2x8x32xf32, #tpu.memory_space<vmem>>, vector<2x8x32xf32>
    %1 = vector.shape_cast %0 : vector<2x8x32xf32> to vector<16x32xf32>
    %2 = arith.truncf %1 : vector<16x32xf32> to vector<16x32xbf16>
    %c0_2 = arith.constant 0 : index
    %c0_3 = arith.constant 0 : index
    %3 = vector.load %arg2[%c0_2, %c0_3] : memref<32x64xbf16, #tpu.memory_space<vmem>>, vector<32x64xbf16>
    %cst = arith.constant dense<0.000000e+00> : vector<16x64xf32>
    %4 = tpu.matmul %2, %3, %cst {dimension_numbers = #tpu.dot_dimension_numbers<[1], [0], [0], [1], [0, 0, 1, 1], [], []>} : vector<16x32xbf16>, vector<32x64xbf16>, vector<16x64xf32> -> vector<16x64xf32>
    %c0_4 = arith.constant 0 : index
    %c0_5 = arith.constant 0 : index
    %5 = vector.load %arg3[%c0_4, %c0_5] : memref<8x8xbf16, #tpu.memory_space<vmem>>, vector<8x8xbf16>
    %c0_6 = arith.constant 0 : index
    %c0_7 = arith.constant 0 : index
    %6 = vector.load %arg4[%c0_6, %c0_7] : memref<8x8xbf16, #tpu.memory_space<vmem>>, vector<8x8xbf16>
    %7 = vector.extract_strided_slice %4 {offsets = [0, 0], sizes = [8, 32], strides = [1, 1]} : vector<16x64xf32> to vector<8x32xf32>
    %8 = arith.truncf %7 : vector<8x32xf32> to vector<8x32xbf16>
    %9 = vector.extract_strided_slice %4 {offsets = [0, 32], sizes = [8, 32], strides = [1, 1]} : vector<16x64xf32> to vector<8x32xf32>
    %10 = arith.truncf %9 : vector<8x32xf32> to vector<8x32xbf16>
    %cst_8 = arith.constant dense<0.000000e+00> : vector<8x32xf32>
    %11 = tpu.matmul %5, %8, %cst_8 {dimension_numbers = #tpu.dot_dimension_numbers<[1], [0], [0], [1], [0, 0, 1, 1], [], []>} : vector<8x8xbf16>, vector<8x32xbf16>, vector<8x32xf32> -> vector<8x32xf32>
    %cst_9 = arith.constant dense<0.000000e+00> : vector<8x32xf32>
    %12 = tpu.matmul %6, %10, %cst_9 {dimension_numbers = #tpu.dot_dimension_numbers<[1], [0], [0], [1], [0, 0, 1, 1], [], []>} : vector<8x8xbf16>, vector<8x32xbf16>, vector<8x32xf32> -> vector<8x32xf32>
    %13 = arith.subf %11, %12 : vector<8x32xf32>
    %c0_10 = arith.constant 0 : index
    %c0_11 = arith.constant 0 : index
    %c0_12 = arith.constant 0 : index
    %14 = vector.load %arg5[%c0_10, %c0_11, %c0_12] : memref<2x8x32xf32, #tpu.memory_space<vmem>>, vector<1x8x32xf32>
    %15 = vector.shape_cast %14 : vector<1x8x32xf32> to vector<8x32xf32>
    %16 = vector.shape_cast %13 : vector<8x32xf32> to vector<1x8x32xf32>
    tpu.vector_store %arg5[%c0_10, %c0_11, %c0_12], %16 {strides = array<i32>} : memref<2x8x32xf32, #tpu.memory_space<vmem>>, vector<1x8x32xf32>,
    %17 = vector.extract_strided_slice %4 {offsets = [8, 0], sizes = [8, 32], strides = [1, 1]} : vector<16x64xf32> to vector<8x32xf32>
    %18 = arith.truncf %17 : vector<8x32xf32> to vector<8x32xbf16>
    %19 = vector.extract_strided_slice %4 {offsets = [8, 32], sizes = [8, 32], strides = [1, 1]} : vector<16x64xf32> to vector<8x32xf32>
    %20 = arith.truncf %19 : vector<8x32xf32> to vector<8x32xbf16>
    %cst_13 = arith.constant dense<0.000000e+00> : vector<8x32xf32>
    %21 = tpu.matmul %5, %18, %cst_13 {dimension_numbers = #tpu.dot_dimension_numbers<[1], [0], [0], [1], [0, 0, 1, 1], [], []>} : vector<8x8xbf16>, vector<8x32xbf16>, vector<8x32xf32> -> vector<8x32xf32>
    %cst_14 = arith.constant dense<0.000000e+00> : vector<8x32xf32>
    %22 = tpu.matmul %6, %20, %cst_14 {dimension_numbers = #tpu.dot_dimension_numbers<[1], [0], [0], [1], [0, 0, 1, 1], [], []>} : vector<8x8xbf16>, vector<8x32xbf16>, vector<8x32xf32> -> vector<8x32xf32>
    %23 = arith.subf %21, %22 : vector<8x32xf32>
    %c1 = arith.constant 1 : index
    %c0_15 = arith.constant 0 : index
    %c0_16 = arith.constant 0 : index
    %24 = vector.load %arg5[%c1, %c0_15, %c0_16] : memref<2x8x32xf32, #tpu.memory_space<vmem>>, vector<1x8x32xf32>
    %25 = vector.shape_cast %24 : vector<1x8x32xf32> to vector<8x32xf32>
    %26 = vector.shape_cast %23 : vector<8x32xf32> to vector<1x8x32xf32>
    tpu.vector_store %arg5[%c1, %c0_15, %c0_16], %26 {strides = array<i32>} : memref<2x8x32xf32, #tpu.memory_space<vmem>>, vector<1x8x32xf32>,
    return
  }
  func.func @transform_0(%arg0: i32) -> (i32, i32, i32) {
    %c0_i32 = arith.constant 0 : i32
    %c0_i32_0 = arith.constant 0 : i32
    %c0_i32_1 = arith.constant 0 : i32
    return %arg0, %c0_i32, %c0_i32_0 : i32, i32, i32
  }
  func.func @transform_1(%arg0: i32) -> (i32, i32) {
    %c0_i32 = arith.constant 0 : i32
    %c0_i32_0 = arith.constant 0 : i32
    %c0_i32_1 = arith.constant 0 : i32
    return %c0_i32, %c0_i32_0 : i32, i32
  }
  func.func @transform_2(%arg0: i32) -> (i32, i32) {
    %c0_i32 = arith.constant 0 : i32
    %c0_i32_0 = arith.constant 0 : i32
    %c0_i32_1 = arith.constant 0 : i32
    return %c0_i32, %c0_i32_0 : i32, i32
  }
  func.func @transform_3(%arg0: i32) -> (i32, i32) {
    %c0_i32 = arith.constant 0 : i32
    %c0_i32_0 = arith.constant 0 : i32
    %c0_i32_1 = arith.constant 0 : i32
    return %c0_i32, %c0_i32_0 : i32, i32
  }
  func.func @transform_4(%arg0: i32) -> (i32, i32, i32) {
    %c0_i32 = arith.constant 0 : i32
    %c0_i32_0 = arith.constant 0 : i32
    %c0_i32_1 = arith.constant 0 : i32
    return %arg0, %c0_i32, %c0_i32_0 : i32, i32, i32
  }
}

module attributes {stable_mosaic.version = 11 : i64} {
  func.func @_fnet_kernel(%arg0: i32, %arg1: memref<2x8x32xf32, #tpu.memory_space<vmem>>, %arg2: memref<32x64xbf16, #tpu.memory_space<vmem>>, %arg3: memref<8x8xbf16, #tpu.memory_space<vmem>>, %arg4: memref<8x8xbf16, #tpu.memory_space<vmem>>, %arg5: memref<2x8x32xf32, #tpu.memory_space<vmem>>) attributes {dimension_semantics = [#tpu.dimension_semantics<parallel>], iteration_bounds = array<i64: 1>, scalar_prefetch = 0 : i64, scratch_operands = 0 : i64, tpu.core_type = #tpu.core_type<tc>, window_params = [{transform_indices = @transform_0, window_bounds = array<i64: 2, 8, 32>}, {pipeline_mode = #tpu.pipeline_mode<synchronous>, transform_indices = @transform_1, window_bounds = array<i64: 32, 64>}, {pipeline_mode = #tpu.pipeline_mode<synchronous>, transform_indices = @transform_2, window_bounds = array<i64: 8, 8>}, {pipeline_mode = #tpu.pipeline_mode<synchronous>, transform_indices = @transform_3, window_bounds = array<i64: 8, 8>}, {transform_indices = @transform_4, window_bounds = array<i64: 2, 8, 32>}]} {
    %c0 = arith.constant 0 : index
    %c0_0 = arith.constant 0 : index
    %c0_1 = arith.constant 0 : index
    %0 = vector.load %arg1[%c0, %c0_0, %c0_1] : memref<2x8x32xf32, #tpu.memory_space<vmem>>, vector<2x8x32xf32>
    %1 = vector.shape_cast %0 : vector<2x8x32xf32> to vector<16x32xf32>
    %2 = arith.truncf %1 : vector<16x32xf32> to vector<16x32xbf16>
    %c0_2 = arith.constant 0 : index
    %c0_3 = arith.constant 0 : index
    %3 = vector.load %arg2[%c0_2, %c0_3] : memref<32x64xbf16, #tpu.memory_space<vmem>>, vector<32x64xbf16>
    %cst = arith.constant dense<0.000000e+00> : vector<16x64xf32>
    %4 = tpu.matmul %2, %3, %cst {dimension_numbers = #tpu.dot_dimension_numbers<[1], [0], [0], [1], [0, 0, 1, 1], [], []>} : vector<16x32xbf16>, vector<32x64xbf16>, vector<16x64xf32> -> vector<16x64xf32>
    %c0_4 = arith.constant 0 : index
    %c0_5 = arith.constant 0 : index
    %5 = vector.load %arg3[%c0_4, %c0_5] : memref<8x8xbf16, #tpu.memory_space<vmem>>, vector<8x8xbf16>
    %c0_6 = arith.constant 0 : index
    %c0_7 = arith.constant 0 : index
    %6 = vector.load %arg4[%c0_6, %c0_7] : memref<8x8xbf16, #tpu.memory_space<vmem>>, vector<8x8xbf16>
    %7 = vector.extract_strided_slice %4 {offsets = [0, 0], sizes = [8, 32], strides = [1, 1]} : vector<16x64xf32> to vector<8x32xf32>
    %8 = arith.truncf %7 : vector<8x32xf32> to vector<8x32xbf16>
    %9 = vector.extract_strided_slice %4 {offsets = [0, 32], sizes = [8, 32], strides = [1, 1]} : vector<16x64xf32> to vector<8x32xf32>
    %10 = arith.truncf %9 : vector<8x32xf32> to vector<8x32xbf16>
    %cst_8 = arith.constant dense<0.000000e+00> : vector<8x32xf32>
    %11 = tpu.matmul %5, %8, %cst_8 {dimension_numbers = #tpu.dot_dimension_numbers<[1], [0], [0], [1], [0, 0, 1, 1], [], []>} : vector<8x8xbf16>, vector<8x32xbf16>, vector<8x32xf32> -> vector<8x32xf32>
    %cst_9 = arith.constant dense<0.000000e+00> : vector<8x32xf32>
    %12 = tpu.matmul %6, %10, %cst_9 {dimension_numbers = #tpu.dot_dimension_numbers<[1], [0], [0], [1], [0, 0, 1, 1], [], []>} : vector<8x8xbf16>, vector<8x32xbf16>, vector<8x32xf32> -> vector<8x32xf32>
    %13 = arith.subf %11, %12 : vector<8x32xf32>
    %c0_10 = arith.constant 0 : index
    %c0_11 = arith.constant 0 : index
    %c0_12 = arith.constant 0 : index
    %14 = vector.load %arg5[%c0_10, %c0_11, %c0_12] : memref<2x8x32xf32, #tpu.memory_space<vmem>>, vector<1x8x32xf32>
    %15 = vector.shape_cast %14 : vector<1x8x32xf32> to vector<8x32xf32>
    %16 = vector.shape_cast %13 : vector<8x32xf32> to vector<1x8x32xf32>
    tpu.vector_store %arg5[%c0_10, %c0_11, %c0_12], %16 {strides = array<i32>} : memref<2x8x32xf32, #tpu.memory_space<vmem>>, vector<1x8x32xf32>,
    %17 = vector.extract_strided_slice %4 {offsets = [8, 0], sizes = [8, 32], strides = [1, 1]} : vector<16x64xf32> to vector<8x32xf32>
    %18 = arith.truncf %17 : vector<8x32xf32> to vector<8x32xbf16>
    %19 = vector.extract_strided_slice %4 {offsets = [8, 32], sizes = [8, 32], strides = [1, 1]} : vector<16x64xf32> to vector<8x32xf32>
    %20 = arith.truncf %19 : vector<8x32xf32> to vector<8x32xbf16>
    %cst_13 = arith.constant dense<0.000000e+00> : vector<8x32xf32>
    %21 = tpu.matmul %5, %18, %cst_13 {dimension_numbers = #tpu.dot_dimension_numbers<[1], [0], [0], [1], [0, 0, 1, 1], [], []>} : vector<8x8xbf16>, vector<8x32xbf16>, vector<8x32xf32> -> vector<8x32xf32>
    %cst_14 = arith.constant dense<0.000000e+00> : vector<8x32xf32>
    %22 = tpu.matmul %6, %20, %cst_14 {dimension_numbers = #tpu.dot_dimension_numbers<[1], [0], [0], [1], [0, 0, 1, 1], [], []>} : vector<8x8xbf16>, vector<8x32xbf16>, vector<8x32xf32> -> vector<8x32xf32>
    %23 = arith.subf %21, %22 : vector<8x32xf32>
    %c1 = arith.constant 1 : index
    %c0_15 = arith.constant 0 : index
    %c0_16 = arith.constant 0 : index
    %24 = vector.load %arg5[%c1, %c0_15, %c0_16] : memref<2x8x32xf32, #tpu.memory_space<vmem>>, vector<1x8x32xf32>
    %25 = vector.shape_cast %24 : vector<1x8x32xf32> to vector<8x32xf32>
    %26 = vector.shape_cast %23 : vector<8x32xf32> to vector<1x8x32xf32>
    tpu.vector_store %arg5[%c1, %c0_15, %c0_16], %26 {strides = array<i32>} : memref<2x8x32xf32, #tpu.memory_space<vmem>>, vector<1x8x32xf32>,
    return
  }
  func.func @transform_0(%arg0: i32) -> (i32, i32, i32) {
    %c0_i32 = arith.constant 0 : i32
    %c0_i32_0 = arith.constant 0 : i32
    %c0_i32_1 = arith.constant 0 : i32
    return %arg0, %c0_i32, %c0_i32_0 : i32, i32, i32
  }
  func.func @transform_1(%arg0: i32) -> (i32, i32) {
    %c0_i32 = arith.constant 0 : i32
    %c0_i32_0 = arith.constant 0 : i32
    %c0_i32_1 = arith.constant 0 : i32
    return %c0_i32, %c0_i32_0 : i32, i32
  }
  func.func @transform_2(%arg0: i32) -> (i32, i32) {
    %c0_i32 = arith.constant 0 : i32
    %c0_i32_0 = arith.constant 0 : i32
    %c0_i32_1 = arith.constant 0 : i32
    return %c0_i32, %c0_i32_0 : i32, i32
  }
  func.func @transform_3(%arg0: i32) -> (i32, i32) {
    %c0_i32 = arith.constant 0 : i32
    %c0_i32_0 = arith.constant 0 : i32
    %c0_i32_1 = arith.constant 0 : i32
    return %c0_i32, %c0_i32_0 : i32, i32
  }
  func.func @transform_4(%arg0: i32) -> (i32, i32, i32) {
    %c0_i32 = arith.constant 0 : i32
    %c0_i32_0 = arith.constant 0 : i32
    %c0_i32_1 = arith.constant 0 : i32
    return %arg0, %c0_i32, %c0_i32_0 : i32, i32, i32
  }
}

</mosaic_0001>

<llo_original>
// kernel: tpu_custom_call.1
$region0: #{tpu_custom_call.1}
  #allocation0 [shape = 'u32[]', space=smem, size = 0x4, offset = 0x4, fixed_abs, tag = 'smem constant byte address 0x4 - core index']
  #allocation1 [shape = 'u32[144,128]{1,0:T(1,128)}', space=vmem, size = 0x12000, scoped, tag = 'internal scratch']
  %s0 = inlined_call_operand.hbm [shape: f32[2,8,32], index: 0, kind: input, shape index: {}]
  %s1 = inlined_call_operand.hbm [shape: bf16[32,64], index: 1, kind: input, shape index: {}]
  %s2 = inlined_call_operand.hbm [shape: bf16[8,8], index: 2, kind: input, shape index: {}]
  %s3 = inlined_call_operand.vmem [shape: bf16[8,8], index: 3, kind: input, shape index: {}]
  %s4 = inlined_call_operand.hbm [shape: f32[2,8,32], index: 4, kind: output, shape index: {}]
  %s5 = sld [smem:[#allocation0]]
  $region38: #{tpu_custom_call.1} parent=0
    _
  %s7 = ssub.s32 1, %s5
  %s8 = scalar_select 0, %s7, %s5
  $region1: #{tpu_custom_call.1} parent=0
    #allocation2 [shape = 'u8[8192]{0}', space=vmem, size = 0x2000, scoped, tag = 'input window, operand 0, single buffered']
    #allocation3 [shape = 's32[1]{0}', space=sflag, size = 0x4, scoped, tag = 'scoped memory for tpu_custom_call.1']
    #allocation4 [shape = 's32[1]{0}', space=sflag, size = 0x4, scoped, tag = 'scoped memory for tpu_custom_call.1']
    #allocation5 [shape = 'u8[8192]{0}', space=vmem, size = 0x2000, scoped, tag = 'input window, operand 1, single buffered']
    #allocation6 [shape = 's32[1]{0}', space=sflag, size = 0x4, scoped, tag = 'scoped memory for tpu_custom_call.1']
    #allocation7 [shape = 'u8[2048]{0}', space=vmem, size = 0x800, scoped, tag = 'input window, operand 2, single buffered']
    #allocation8 [shape = 'u8[8192]{0}', space=vmem, size = 0x2000, scoped, tag = 'output window, operand 0, single buffered']
    %9 = vsyncpa [#allocation3], 0
    %10 = vsyncpa [#allocation6], 0
    %11 = vsyncpa [#allocation4], 0
    // Predicated region
    $region2: #{tpu_custom_call.1} parent=1 // pred_check
      _
    $region3: #{tpu_custom_call.1} parent=1 // pred_check_branch
      %13 = sbr.rel (0) target = $region5
    $region4: #{tpu_custom_call.1} parent=1 // pred_region
      %s15 = ssub.s32 256, 256
      %16 = vsyncadd [#allocation3], %s15
      %s17 = sshll.u32 [#allocation2], 4
      %s18 = int_to_ptr.vmem [resolvable:$true] %s17
      %23 = dma.hbm_to_vmem [thread:$0]  %s0, 256, %s18, [#allocation3], 128, 128, 8
    $region5: #{tpu_custom_call.1} parent=1 // pred_fallthru
      _
    // Predicated region
    $region6: #{tpu_custom_call.1} parent=1 // pred_check
      _
    $region7: #{tpu_custom_call.1} parent=1 // pred_check_branch
      %25 = sbr.rel (0) target = $region9
    $region8: #{tpu_custom_call.1} parent=1 // pred_region
      %s27 = ssub.s32 256, 256
      %28 = vsyncadd [#allocation6], %s27
      %s29 = sshll.u32 [#allocation5], 4
      %s30 = int_to_ptr.vmem [resolvable:$true] %s29
      %35 = dma.hbm_to_vmem [thread:$0]  %s1, 256, %s30, [#allocation6], 64, 64, 4
    $region9: #{tpu_custom_call.1} parent=1 // pred_fallthru
      _
    // Predicated region
    $region10: #{tpu_custom_call.1} parent=1 // pred_check
      _
    $region11: #{tpu_custom_call.1} parent=1 // pred_check_branch
      %37 = sbr.rel (0) target = $region13
    $region12: #{tpu_custom_call.1} parent=1 // pred_region
      %s39 = ssub.s32 64, 64
      %40 = vsyncadd [#allocation6], %s39
      %s42 = sshll.u32 [#allocation7], 4
      %s43 = int_to_ptr.vmem [resolvable:$true] %s42
      %45 = dma.hbm_to_vmem [thread:$0]  %s2, 64, %s43, [#allocation6]
    $region13: #{tpu_custom_call.1} parent=1 // pred_fallthru
      _
    // Predicated region
    $region14: #{tpu_custom_call.1} parent=1 // pred_check
      _
    $region15: #{tpu_custom_call.1} parent=1 // pred_check_branch
      %47 = sbr.rel (0) target = $region17
    $region16: #{tpu_custom_call.1} parent=1 // pred_region
      _
    $region17: #{tpu_custom_call.1} parent=1 // pred_fallthru
      _
    // Predicated region
    $region18: #{tpu_custom_call.1} parent=1 // pred_check
      _
    $region19: #{tpu_custom_call.1} parent=1 // pred_check_branch
      %49 = sbr.rel (0) target = $region21
    $region20: #{tpu_custom_call.1} parent=1 // pred_region
      %50 = dma.done [#allocation3], 256
    $region21: #{tpu_custom_call.1} parent=1 // pred_fallthru
      _
    // Predicated region
    $region22: #{tpu_custom_call.1} parent=1 // pred_check
      _
    $region23: #{tpu_custom_call.1} parent=1 // pred_check_branch
      %52 = sbr.rel (0) target = $region25
    $region24: #{tpu_custom_call.1} parent=1 // pred_region
      %53 = dma.done [#allocation6], 256
    $region25: #{tpu_custom_call.1} parent=1 // pred_fallthru
      _
    // Predicated region
    $region26: #{tpu_custom_call.1} parent=1 // pred_check
      _
    $region27: #{tpu_custom_call.1} parent=1 // pred_check_branch
      %55 = sbr.rel (0) target = $region29
    $region28: #{tpu_custom_call.1} parent=1 // pred_region
      %56 = dma.done [#allocation6], 64
    $region29: #{tpu_custom_call.1} parent=1 // pred_fallthru
      _
    %v58 = vld [vmem:[#allocation2] sm:$0xff]
    %v59 = vld [vmem:[#allocation2 + $0x8] sm:$0xff]
    %v60 = vpack.c.bf16 %v59, %v58
    %v61 = vld [vmem:[#allocation5] sm:$0xf]
    %v62 = vld [vmem:[#allocation5 + $0x4] sm:$0xf]
    %v63 = vld [vmem:[#allocation5 + $0x8] sm:$0xf]
    %v64 = vld [vmem:[#allocation5 + $0xc] sm:$0xf]
    %v69 = vunpack.c.l.b16 %v61
    %v70 = vunpack.c.l.b16 %v62
    %v71 = vunpack.c.l.b16 %v63
    %v72 = vunpack.c.l.b16 %v64
    %v73 = vpack.c.b16 %v70, %v69
    %v74 = vpack.c.b16 %v72, %v71
    %vm77 = vcmask 261120
    %v79 = vsel %vm77, %v60, 0
    %81 = vmatprep.subr.bf16.mxu0 0
    %82 = vmatpush1.bf16.msra.mxu0 0
    %83 = vmatprep.subr.bf16.mxu0 0
    %84 = vmatpush1.bf16.msra.mxu0 0
    %85 = vmatprep.subr.bf16.mxu0 0
    %86 = vmatpush1.bf16.msra.mxu0 0
    %87 = vmatprep.subr.bf16.mxu0 0
    %88 = vmatpush1.bf16.msra.mxu0 0
    %89 = vmatprep.subr.bf16.mxu0 0
    %90 = vmatpush1.bf16.msra.mxu0 0
    %91 = vmatprep.subr.bf16.mxu0 0
    %92 = vmatpush1.bf16.msra.mxu0 0
    %93 = vmatprep.subr.bf16.mxu0 0
    %94 = vmatpush1.bf16.msra.mxu0 %v74
    %95 = vmatprep.subr.bf16.mxu0 0
    %96 = vmatpush1.bf16.msra.mxu0 %v73
    %97 = vmatprep.subr.bf16.mxu0 0
    %98 = vmatpush2.bf16.msra.mxu0 0
    %99 = vmatprep.subr.bf16.mxu0 0
    %100 = vmatpush2.bf16.msra.mxu0 0
    %101 = vmatprep.subr.bf16.mxu0 0
    %102 = vmatpush2.bf16.msra.mxu0 0
    %103 = vmatprep.subr.bf16.mxu0 0
    %104 = vmatpush2.bf16.msra.mxu0 0
    %105 = vmatprep.subr.bf16.mxu0 0
    %106 = vmatpush2.bf16.msra.mxu0 0
    %107 = vmatprep.subr.bf16.mxu0 0
    %108 = vmatpush2.bf16.msra.mxu0 0
    %109 = vmatprep.subr.bf16.mxu0 0
    %110 = vmatpush2.bf16.msra.mxu0 0
    %111 = vmatprep.subr.bf16.mxu0 0
    %112 = vmatpush2.bf16.msra.mxu0 0
    %113 = vmatprep.mubr.bf16.mxu0 0
    %114 = vmatmul.mubr.bf16.gmra.mxu0 %v79
    %v115 = vpop.f32.mrf.mxu0
    %v116 = vadd.f32 0.0, %v115
    %v117 = vpop.f32.mrf.mxu0
    %v118 = vpop.f32.mrf.mxu0
    %v119 = vadd.f32 0.0, %v118
    %v120 = vpop.f32.mrf.mxu0
    %121 = vdwg.mxu0
    %v122 = vld [vmem:[#allocation7] sm:$0xf]
    %v123 = vld [vmem:[%s3] sm:$0xf]
    %v124 = vpack.c.bf16 %v116, %v116
    %vm125 = vcmask 64512
    %v127 = vsel %vm125, %v122, 0
    %vm129 = vcmask 1043456
    %v131 = vsel %vm129, %v124, 0
    %133 = vmatprep.subr.bf16.mxu0 0
    %134 = vmatpush1.bf16.msra.mxu0 0
    %135 = vmatprep.subr.bf16.mxu0 0
    %136 = vmatpush1.bf16.msra.mxu0 0
    %137 = vmatprep.subr.bf16.mxu0 0
    %138 = vmatpush1.bf16.msra.mxu0 0
    %139 = vmatprep.subr.bf16.mxu0 0
    %140 = vmatpush1.bf16.msra.mxu0 0
    %141 = vmatprep.subr.bf16.mxu0 0
    %142 = vmatpush1.bf16.msra.mxu0 0
    %143 = vmatprep.subr.bf16.mxu0 0
    %144 = vmatpush1.bf16.msra.mxu0 0
    %145 = vmatprep.subr.bf16.mxu0 0
    %146 = vmatpush1.bf16.msra.mxu0 0
    %147 = vmatprep.subr.bf16.mxu0 0
    %148 = vmatpush1.bf16.msra.mxu0 %v131
    %149 = vmatprep.subr.bf16.mxu0 0
    %150 = vmatpush2.bf16.msra.mxu0 0
    %151 = vmatprep.subr.bf16.mxu0 0
    %152 = vmatpush2.bf16.msra.mxu0 0
    %153 = vmatprep.subr.bf16.mxu0 0
    %154 = vmatpush2.bf16.msra.mxu0 0
    %155 = vmatprep.subr.bf16.mxu0 0
    %156 = vmatpush2.bf16.msra.mxu0 0
    %157 = vmatprep.subr.bf16.mxu0 0
    %158 = vmatpush2.bf16.msra.mxu0 0
    %159 = vmatprep.subr.bf16.mxu0 0
    %160 = vmatpush2.bf16.msra.mxu0 0
    %161 = vmatprep.subr.bf16.mxu0 0
    %162 = vmatpush2.bf16.msra.mxu0 0
    %163 = vmatprep.subr.bf16.mxu0 0
    %164 = vmatpush2.bf16.msra.mxu0 0
    %165 = vmatprep.mubr.bf16.mxu0 0
    %166 = vmatmul.mubr.bf16.gmra.mxu0 %v127
    %v167 = vpop.f32.mrf.mxu0
    %v168 = vadd.f32 0.0, %v167
    %v169 = vpop.f32.mrf.mxu0
    %v170 = vpop.f32.mrf.mxu0
    %v171 = vpop.f32.mrf.mxu0
    %172 = vdwg.mxu0
    %174 = vrot.lane.b32.xlu0 %v124, 96
    %v175 = vpop.permute.xlu0 %174
    %v177 = vsel %vm125, %v123, 0
    %v180 = vsel %vm129, %v175, 0
    %182 = vmatprep.subr.bf16.mxu0 0
    %183 = vmatpush1.bf16.msra.mxu0 0
    %184 = vmatprep.subr.bf16.mxu0 0
    %185 = vmatpush1.bf16.msra.mxu0 0
    %186 = vmatprep.subr.bf16.mxu0 0
    %187 = vmatpush1.bf16.msra.mxu0 0
    %188 = vmatprep.subr.bf16.mxu0 0
    %189 = vmatpush1.bf16.msra.mxu0 0
    %190 = vmatprep.subr.bf16.mxu0 0
    %191 = vmatpush1.bf16.msra.mxu0 0
    %192 = vmatprep.subr.bf16.mxu0 0
    %193 = vmatpush1.bf16.msra.mxu0 0
    %194 = vmatprep.subr.bf16.mxu0 0
    %195 = vmatpush1.bf16.msra.mxu0 0
    %196 = vmatprep.subr.bf16.mxu0 0
    %197 = vmatpush1.bf16.msra.mxu0 %v180
    %198 = vmatprep.subr.bf16.mxu0 0
    %199 = vmatpush2.bf16.msra.mxu0 0
    %200 = vmatprep.subr.bf16.mxu0 0
    %201 = vmatpush2.bf16.msra.mxu0 0
    %202 = vmatprep.subr.bf16.mxu0 0
    %203 = vmatpush2.bf16.msra.mxu0 0
    %204 = vmatprep.subr.bf16.mxu0 0
    %205 = vmatpush2.bf16.msra.mxu0 0
    %206 = vmatprep.subr.bf16.mxu0 0
    %207 = vmatpush2.bf16.msra.mxu0 0
    %208 = vmatprep.subr.bf16.mxu0 0
    %209 = vmatpush2.bf16.msra.mxu0 0
    %210 = vmatprep.subr.bf16.mxu0 0
    %211 = vmatpush2.bf16.msra.mxu0 0
    %212 = vmatprep.subr.bf16.mxu0 0
    %213 = vmatpush2.bf16.msra.mxu0 0
    %214 = vmatprep.mubr.bf16.mxu0 0
    %215 = vmatmul.mubr.bf16.gmra.mxu0 %v177
    %v216 = vpop.f32.mrf.mxu0
    %v217 = vadd.f32 0.0, %v216
    %v218 = vpop.f32.mrf.mxu0
    %v219 = vpop.f32.mrf.mxu0
    %v220 = vpop.f32.mrf.mxu0
    %221 = vdwg.mxu0
    %v222 = vsub.f32 %v168, %v217
    %223 = vst.msk [vmem:[#allocation8] sm:$0xff] %vm77, %v222
    %v224 = vpack.c.bf16 %v119, %v119
    %v226 = vsel %vm129, %v224, 0
    %228 = vmatprep.subr.bf16.mxu0 0
    %229 = vmatpush1.bf16.msra.mxu0 0
    %230 = vmatprep.subr.bf16.mxu0 0
    %231 = vmatpush1.bf16.msra.mxu0 0
    %232 = vmatprep.subr.bf16.mxu0 0
    %233 = vmatpush1.bf16.msra.mxu0 0
    %234 = vmatprep.subr.bf16.mxu0 0
    %235 = vmatpush1.bf16.msra.mxu0 0
    %236 = vmatprep.subr.bf16.mxu0 0
    %237 = vmatpush1.bf16.msra.mxu0 0
    %238 = vmatprep.subr.bf16.mxu0 0
    %239 = vmatpush1.bf16.msra.mxu0 0
    %240 = vmatprep.subr.bf16.mxu0 0
    %241 = vmatpush1.bf16.msra.mxu0 0
    %242 = vmatprep.subr.bf16.mxu0 0
    %243 = vmatpush1.bf16.msra.mxu0 %v226
    %244 = vmatprep.subr.bf16.mxu0 0
    %245 = vmatpush2.bf16.msra.mxu0 0
    %246 = vmatprep.subr.bf16.mxu0 0
    %247 = vmatpush2.bf16.msra.mxu0 0
    %248 = vmatprep.subr.bf16.mxu0 0
    %249 = vmatpush2.bf16.msra.mxu0 0
    %250 = vmatprep.subr.bf16.mxu0 0
    %251 = vmatpush2.bf16.msra.mxu0 0
    %252 = vmatprep.subr.bf16.mxu0 0
    %253 = vmatpush2.bf16.msra.mxu0 0
    %254 = vmatprep.subr.bf16.mxu0 0
    %255 = vmatpush2.bf16.msra.mxu0 0
    %256 = vmatprep.subr.bf16.mxu0 0
    %257 = vmatpush2.bf16.msra.mxu0 0
    %258 = vmatprep.subr.bf16.mxu0 0
    %259 = vmatpush2.bf16.msra.mxu0 0
    %260 = vmatprep.mubr.bf16.mxu0 0
    %261 = vmatmul.mubr.bf16.gmra.mxu0 %v127
    %v262 = vpop.f32.mrf.mxu0
    %v263 = vadd.f32 0.0, %v262
    %v264 = vpop.f32.mrf.mxu0
    %v265 = vpop.f32.mrf.mxu0
    %v266 = vpop.f32.mrf.mxu0
    %267 = vdwg.mxu0
    %269 = vrot.lane.b32.xlu0 %v224, 96
    %v270 = vpop.permute.xlu0 %269
    %v272 = vsel %vm129, %v270, 0
    %274 = vmatprep.subr.bf16.mxu0 0
    %275 = vmatpush1.bf16.msra.mxu0 0
    %276 = vmatprep.subr.bf16.mxu0 0
    %277 = vmatpush1.bf16.msra.mxu0 0
    %278 = vmatprep.subr.bf16.mxu0 0
    %279 = vmatpush1.bf16.msra.mxu0 0
    %280 = vmatprep.subr.bf16.mxu0 0
    %281 = vmatpush1.bf16.msra.mxu0 0
    %282 = vmatprep.subr.bf16.mxu0 0
    %283 = vmatpush1.bf16.msra.mxu0 0
    %284 = vmatprep.subr.bf16.mxu0 0
    %285 = vmatpush1.bf16.msra.mxu0 0
    %286 = vmatprep.subr.bf16.mxu0 0
    %287 = vmatpush1.bf16.msra.mxu0 0
    %288 = vmatprep.subr.bf16.mxu0 0
    %289 = vmatpush1.bf16.msra.mxu0 %v272
    %290 = vmatprep.subr.bf16.mxu0 0
    %291 = vmatpush2.bf16.msra.mxu0 0
    %292 = vmatprep.subr.bf16.mxu0 0
    %293 = vmatpush2.bf16.msra.mxu0 0
    %294 = vmatprep.subr.bf16.mxu0 0
    %295 = vmatpush2.bf16.msra.mxu0 0
    %296 = vmatprep.subr.bf16.mxu0 0
    %297 = vmatpush2.bf16.msra.mxu0 0
    %298 = vmatprep.subr.bf16.mxu0 0
    %299 = vmatpush2.bf16.msra.mxu0 0
    %300 = vmatprep.subr.bf16.mxu0 0
    %301 = vmatpush2.bf16.msra.mxu0 0
    %302 = vmatprep.subr.bf16.mxu0 0
    %303 = vmatpush2.bf16.msra.mxu0 0
    %304 = vmatprep.subr.bf16.mxu0 0
    %305 = vmatpush2.bf16.msra.mxu0 0
    %306 = vmatprep.mubr.bf16.mxu0 0
    %307 = vmatmul.mubr.bf16.gmra.mxu0 %v177
    %v308 = vpop.f32.mrf.mxu0
    %v309 = vadd.f32 0.0, %v308
    %v310 = vpop.f32.mrf.mxu0
    %v311 = vpop.f32.mrf.mxu0
    %v312 = vpop.f32.mrf.mxu0
    %313 = vdwg.mxu0
    %v314 = vsub.f32 %v263, %v309
    %s315 = scalar_lea.vmem [#allocation8], 8
    %316 = vst.msk [vmem:[%s315] sm:$0xff] %vm77, %v314
    // Predicated region
    $region30: #{tpu_custom_call.1} parent=1 // pred_check
      _
    $region31: #{tpu_custom_call.1} parent=1 // pred_check_branch
      %318 = sbr.rel (0) target = $region33
    $region32: #{tpu_custom_call.1} parent=1 // pred_region
      %s320 = ssub.s32 256, 256
      %321 = vsyncadd [#allocation4], %s320
      %s322 = sshll.u32 [#allocation8], 4
      %s323 = int_to_ptr.vmem [resolvable:$true] %s322
      %328 = dma.vmem_to_hbm [thread:$0]  %s323, 256, %s4, [#allocation4], 128, 128, 8
    $region33: #{tpu_custom_call.1} parent=1 // pred_fallthru
      _
    // Predicated region
    $region34: #{tpu_custom_call.1} parent=1 // pred_check
      _
    $region35: #{tpu_custom_call.1} parent=1 // pred_check_branch
      %330 = sbr.rel (0) target = $region37
    $region36: #{tpu_custom_call.1} parent=1 // pred_region
      %331 = dma.done [#allocation4], 256
    $region37: #{tpu_custom_call.1} parent=1 // pred_fallthru
      _
    %332 = vsyncpa [#allocation3], 1
    %333 = vsyncpa [#allocation6], 1
    %334 = vsyncpa [#allocation4], 1

// kernel: tpu_custom_call.1
$region0: #{tpu_custom_call.1}
  #allocation0 [shape = 'u32[]', space=smem, size = 0x4, offset = 0x4, fixed_abs, tag = 'smem constant byte address 0x4 - core index']
  #allocation1 [shape = 'u32[144,128]{1,0:T(1,128)}', space=vmem, size = 0x12000, scoped, tag = 'internal scratch']
  %s0 = inlined_call_operand.hbm [shape: f32[2,8,32], index: 0, kind: input, shape index: {}]
  %s1 = inlined_call_operand.hbm [shape: bf16[32,64], index: 1, kind: input, shape index: {}]
  %s2 = inlined_call_operand.hbm [shape: bf16[8,8], index: 2, kind: input, shape index: {}]
  %s3 = inlined_call_operand.vmem [shape: bf16[8,8], index: 3, kind: input, shape index: {}]
  %s4 = inlined_call_operand.hbm [shape: f32[2,8,32], index: 4, kind: output, shape index: {}]
  %s5 = sld [smem:[#allocation0]]
  $region38: #{tpu_custom_call.1} parent=0
    _
  %s7 = ssub.s32 1, %s5
  %s8 = scalar_select 0, %s7, %s5
  $region1: #{tpu_custom_call.1} parent=0
    #allocation2 [shape = 'u8[8192]{0}', space=vmem, size = 0x2000, scoped, tag = 'input window, operand 0, single buffered']
    #allocation3 [shape = 's32[1]{0}', space=sflag, size = 0x4, scoped, tag = 'scoped memory for tpu_custom_call.1']
    #allocation4 [shape = 's32[1]{0}', space=sflag, size = 0x4, scoped, tag = 'scoped memory for tpu_custom_call.1']
    #allocation5 [shape = 'u8[8192]{0}', space=vmem, size = 0x2000, scoped, tag = 'input window, operand 1, single buffered']
    #allocation6 [shape = 's32[1]{0}', space=sflag, size = 0x4, scoped, tag = 'scoped memory for tpu_custom_call.1']
    #allocation7 [shape = 'u8[2048]{0}', space=vmem, size = 0x800, scoped, tag = 'input window, operand 2, single buffered']
    #allocation8 [shape = 'u8[8192]{0}', space=vmem, size = 0x2000, scoped, tag = 'output window, operand 0, single buffered']
    %9 = vsyncpa [#allocation3], 0
    %10 = vsyncpa [#allocation6], 0
    %11 = vsyncpa [#allocation4], 0
    // Predicated region
    $region2: #{tpu_custom_call.1} parent=1 // pred_check
      _
    $region3: #{tpu_custom_call.1} parent=1 // pred_check_branch
      %13 = sbr.rel (0) target = $region5
    $region4: #{tpu_custom_call.1} parent=1 // pred_region
      %s15 = ssub.s32 256, 256
      %16 = vsyncadd [#allocation3], %s15
      %s17 = sshll.u32 [#allocation2], 4
      %s18 = int_to_ptr.vmem [resolvable:$true] %s17
      %23 = dma.hbm_to_vmem [thread:$0]  %s0, 256, %s18, [#allocation3], 128, 128, 8
    $region5: #{tpu_custom_call.1} parent=1 // pred_fallthru
      _
    // Predicated region
    $region6: #{tpu_custom_call.1} parent=1 // pred_check
      _
    $region7: #{tpu_custom_call.1} parent=1 // pred_check_branch
      %25 = sbr.rel (0) target = $region9
    $region8: #{tpu_custom_call.1} parent=1 // pred_region
      %s27 = ssub.s32 256, 256
      %28 = vsyncadd [#allocation6], %s27
      %s29 = sshll.u32 [#allocation5], 4
      %s30 = int_to_ptr.vmem [resolvable:$true] %s29
      %35 = dma.hbm_to_vmem [thread:$0]  %s1, 256, %s30, [#allocation6], 64, 64, 4
    $region9: #{tpu_custom_call.1} parent=1 // pred_fallthru
      _
    // Predicated region
    $region10: #{tpu_custom_call.1} parent=1 // pred_check
      _
    $region11: #{tpu_custom_call.1} parent=1 // pred_check_branch
      %37 = sbr.rel (0) target = $region13
    $region12: #{tpu_custom_call.1} parent=1 // pred_region
      %s39 = ssub.s32 64, 64
      %40 = vsyncadd [#allocation6], %s39
      %s42 = sshll.u32 [#allocation7], 4
      %s43 = int_to_ptr.vmem [resolvable:$true] %s42
      %45 = dma.hbm_to_vmem [thread:$0]  %s2, 64, %s43, [#allocation6]
    $region13: #{tpu_custom_call.1} parent=1 // pred_fallthru
      _
    // Predicated region
    $region14: #{tpu_custom_call.1} parent=1 // pred_check
      _
    $region15: #{tpu_custom_call.1} parent=1 // pred_check_branch
      %47 = sbr.rel (0) target = $region17
    $region16: #{tpu_custom_call.1} parent=1 // pred_region
      _
    $region17: #{tpu_custom_call.1} parent=1 // pred_fallthru
      _
    // Predicated region
    $region18: #{tpu_custom_call.1} parent=1 // pred_check
      _
    $region19: #{tpu_custom_call.1} parent=1 // pred_check_branch
      %49 = sbr.rel (0) target = $region21
    $region20: #{tpu_custom_call.1} parent=1 // pred_region
      %50 = dma.done [#allocation3], 256
    $region21: #{tpu_custom_call.1} parent=1 // pred_fallthru
      _
    // Predicated region
    $region22: #{tpu_custom_call.1} parent=1 // pred_check
      _
    $region23: #{tpu_custom_call.1} parent=1 // pred_check_branch
      %52 = sbr.rel (0) target = $region25
    $region24: #{tpu_custom_call.1} parent=1 // pred_region
      %53 = dma.done [#allocation6], 256
    $region25: #{tpu_custom_call.1} parent=1 // pred_fallthru
      _
    // Predicated region
    $region26: #{tpu_custom_call.1} parent=1 // pred_check
      _
    $region27: #{tpu_custom_call.1} parent=1 // pred_check_branch
      %55 = sbr.rel (0) target = $region29
    $region28: #{tpu_custom_call.1} parent=1 // pred_region
      %56 = dma.done [#allocation6], 64
    $region29: #{tpu_custom_call.1} parent=1 // pred_fallthru
      _
    %v58 = vld [vmem:[#allocation2] sm:$0xff]
    %v59 = vld [vmem:[#allocation2 + $0x8] sm:$0xff]
    %v60 = vpack.c.bf16 %v59, %v58
    %v61 = vld [vmem:[#allocation5] sm:$0xf]
    %v62 = vld [vmem:[#allocation5 + $0x4] sm:$0xf]
    %v63 = vld [vmem:[#allocation5 + $0x8] sm:$0xf]
    %v64 = vld [vmem:[#allocation5 + $0xc] sm:$0xf]
    %v69 = vunpack.c.l.b16 %v61
    %v70 = vunpack.c.l.b16 %v62
    %v71 = vunpack.c.l.b16 %v63
    %v72 = vunpack.c.l.b16 %v64
    %v73 = vpack.c.b16 %v70, %v69
    %v74 = vpack.c.b16 %v72, %v71
    %vm77 = vcmask 261120
    %v79 = vsel %vm77, %v60, 0
    %81 = vmatprep.subr.bf16.mxu0 0
    %82 = vmatpush1.bf16.msra.mxu0 0
    %83 = vmatprep.subr.bf16.mxu0 0
    %84 = vmatpush1.bf16.msra.mxu0 0
    %85 = vmatprep.subr.bf16.mxu0 0
    %86 = vmatpush1.bf16.msra.mxu0 0
    %87 = vmatprep.subr.bf16.mxu0 0
    %88 = vmatpush1.bf16.msra.mxu0 0
    %89 = vmatprep.subr.bf16.mxu0 0
    %90 = vmatpush1.bf16.msra.mxu0 0
    %91 = vmatprep.subr.bf16.mxu0 0
    %92 = vmatpush1.bf16.msra.mxu0 0
    %93 = vmatprep.subr.bf16.mxu0 0
    %94 = vmatpush1.bf16.msra.mxu0 %v74
    %95 = vmatprep.subr.bf16.mxu0 0
    %96 = vmatpush1.bf16.msra.mxu0 %v73
    %97 = vmatprep.subr.bf16.mxu0 0
    %98 = vmatpush2.bf16.msra.mxu0 0
    %99 = vmatprep.subr.bf16.mxu0 0
    %100 = vmatpush2.bf16.msra.mxu0 0
    %101 = vmatprep.subr.bf16.mxu0 0
    %102 = vmatpush2.bf16.msra.mxu0 0
    %103 = vmatprep.subr.bf16.mxu0 0
    %104 = vmatpush2.bf16.msra.mxu0 0
    %105 = vmatprep.subr.bf16.mxu0 0
    %106 = vmatpush2.bf16.msra.mxu0 0
    %107 = vmatprep.subr.bf16.mxu0 0
    %108 = vmatpush2.bf16.msra.mxu0 0
    %109 = vmatprep.subr.bf16.mxu0 0
    %110 = vmatpush2.bf16.msra.mxu0 0
    %111 = vmatprep.subr.bf16.mxu0 0
    %112 = vmatpush2.bf16.msra.mxu0 0
    %113 = vmatprep.mubr.bf16.mxu0 0
    %114 = vmatmul.mubr.bf16.gmra.mxu0 %v79
    %v115 = vpop.f32.mrf.mxu0
    %v116 = vadd.f32 0.0, %v115
    %v117 = vpop.f32.mrf.mxu0
    %v118 = vpop.f32.mrf.mxu0
    %v119 = vadd.f32 0.0, %v118
    %v120 = vpop.f32.mrf.mxu0
    %121 = vdwg.mxu0
    %v122 = vld [vmem:[#allocation7] sm:$0xf]
    %v123 = vld [vmem:[%s3] sm:$0xf]
    %v124 = vpack.c.bf16 %v116, %v116
    %vm125 = vcmask 64512
    %v127 = vsel %vm125, %v122, 0
    %vm129 = vcmask 1043456
    %v131 = vsel %vm129, %v124, 0
    %133 = vmatprep.subr.bf16.mxu0 0
    %134 = vmatpush1.bf16.msra.mxu0 0
    %135 = vmatprep.subr.bf16.mxu0 0
    %136 = vmatpush1.bf16.msra.mxu0 0
    %137 = vmatprep.subr.bf16.mxu0 0
    %138 = vmatpush1.bf16.msra.mxu0 0
    %139 = vmatprep.subr.bf16.mxu0 0
    %140 = vmatpush1.bf16.msra.mxu0 0
    %141 = vmatprep.subr.bf16.mxu0 0
    %142 = vmatpush1.bf16.msra.mxu0 0
    %143 = vmatprep.subr.bf16.mxu0 0
    %144 = vmatpush1.bf16.msra.mxu0 0
    %145 = vmatprep.subr.bf16.mxu0 0
    %146 = vmatpush1.bf16.msra.mxu0 0
    %147 = vmatprep.subr.bf16.mxu0 0
    %148 = vmatpush1.bf16.msra.mxu0 %v131
    %149 = vmatprep.subr.bf16.mxu0 0
    %150 = vmatpush2.bf16.msra.mxu0 0
    %151 = vmatprep.subr.bf16.mxu0 0
    %152 = vmatpush2.bf16.msra.mxu0 0
    %153 = vmatprep.subr.bf16.mxu0 0
    %154 = vmatpush2.bf16.msra.mxu0 0
    %155 = vmatprep.subr.bf16.mxu0 0
    %156 = vmatpush2.bf16.msra.mxu0 0
    %157 = vmatprep.subr.bf16.mxu0 0
    %158 = vmatpush2.bf16.msra.mxu0 0
    %159 = vmatprep.subr.bf16.mxu0 0
    %160 = vmatpush2.bf16.msra.mxu0 0
    %161 = vmatprep.subr.bf16.mxu0 0
    %162 = vmatpush2.bf16.msra.mxu0 0
    %163 = vmatprep.subr.bf16.mxu0 0
    %164 = vmatpush2.bf16.msra.mxu0 0
    %165 = vmatprep.mubr.bf16.mxu0 0
    %166 = vmatmul.mubr.bf16.gmra.mxu0 %v127
    %v167 = vpop.f32.mrf.mxu0
    %v168 = vadd.f32 0.0, %v167
    %v169 = vpop.f32.mrf.mxu0
    %v170 = vpop.f32.mrf.mxu0
    %v171 = vpop.f32.mrf.mxu0
    %172 = vdwg.mxu0
    %174 = vrot.lane.b32.xlu0 %v124, 96
    %v175 = vpop.permute.xlu0 %174
    %v177 = vsel %vm125, %v123, 0
    %v180 = vsel %vm129, %v175, 0
    %182 = vmatprep.subr.bf16.mxu0 0
    %183 = vmatpush1.bf16.msra.mxu0 0
    %184 = vmatprep.subr.bf16.mxu0 0
    %185 = vmatpush1.bf16.msra.mxu0 0
    %186 = vmatprep.subr.bf16.mxu0 0
    %187 = vmatpush1.bf16.msra.mxu0 0
    %188 = vmatprep.subr.bf16.mxu0 0
    %189 = vmatpush1.bf16.msra.mxu0 0
    %190 = vmatprep.subr.bf16.mxu0 0
    %191 = vmatpush1.bf16.msra.mxu0 0
    %192 = vmatprep.subr.bf16.mxu0 0
    %193 = vmatpush1.bf16.msra.mxu0 0
    %194 = vmatprep.subr.bf16.mxu0 0
    %195 = vmatpush1.bf16.msra.mxu0 0
    %196 = vmatprep.subr.bf16.mxu0 0
    %197 = vmatpush1.bf16.msra.mxu0 %v180
    %198 = vmatprep.subr.bf16.mxu0 0
    %199 = vmatpush2.bf16.msra.mxu0 0
    %200 = vmatprep.subr.bf16.mxu0 0
    %201 = vmatpush2.bf16.msra.mxu0 0
    %202 = vmatprep.subr.bf16.mxu0 0
    %203 = vmatpush2.bf16.msra.mxu0 0
    %204 = vmatprep.subr.bf16.mxu0 0
    %205 = vmatpush2.bf16.msra.mxu0 0
    %206 = vmatprep.subr.bf16.mxu0 0
    %207 = vmatpush2.bf16.msra.mxu0 0
    %208 = vmatprep.subr.bf16.mxu0 0
    %209 = vmatpush2.bf16.msra.mxu0 0
    %210 = vmatprep.subr.bf16.mxu0 0
    %211 = vmatpush2.bf16.msra.mxu0 0
    %212 = vmatprep.subr.bf16.mxu0 0
    %213 = vmatpush2.bf16.msra.mxu0 0
    %214 = vmatprep.mubr.bf16.mxu0 0
    %215 = vmatmul.mubr.bf16.gmra.mxu0 %v177
    %v216 = vpop.f32.mrf.mxu0
    %v217 = vadd.f32 0.0, %v216
    %v218 = vpop.f32.mrf.mxu0
    %v219 = vpop.f32.mrf.mxu0
    %v220 = vpop.f32.mrf.mxu0
    %221 = vdwg.mxu0
    %v222 = vsub.f32 %v168, %v217
    %223 = vst.msk [vmem:[#allocation8] sm:$0xff] %vm77, %v222
    %v224 = vpack.c.bf16 %v119, %v119
    %v226 = vsel %vm129, %v224, 0
    %228 = vmatprep.subr.bf16.mxu0 0
    %229 = vmatpush1.bf16.msra.mxu0 0
    %230 = vmatprep.subr.bf16.mxu0 0
    %231 = vmatpush1.bf16.msra.mxu0 0
    %232 = vmatprep.subr.bf16.mxu0 0
    %233 = vmatpush1.bf16.msra.mxu0 0
    %234 = vmatprep.subr.bf16.mxu0 0
    %235 = vmatpush1.bf16.msra.mxu0 0
    %236 = vmatprep.subr.bf16.mxu0 0
    %237 = vmatpush1.bf16.msra.mxu0 0
    %238 = vmatprep.subr.bf16.mxu0 0
    %239 = vmatpush1.bf16.msra.mxu0 0
    %240 = vmatprep.subr.bf16.mxu0 0
    %241 = vmatpush1.bf16.msra.mxu0 0
    %242 = vmatprep.subr.bf16.mxu0 0
    %243 = vmatpush1.bf16.msra.mxu0 %v226
    %244 = vmatprep.subr.bf16.mxu0 0
    %245 = vmatpush2.bf16.msra.mxu0 0
    %246 = vmatprep.subr.bf16.mxu0 0
    %247 = vmatpush2.bf16.msra.mxu0 0
    %248 = vmatprep.subr.bf16.mxu0 0
    %249 = vmatpush2.bf16.msra.mxu0 0
    %250 = vmatprep.subr.bf16.mxu0 0
    %251 = vmatpush2.bf16.msra.mxu0 0
    %252 = vmatprep.subr.bf16.mxu0 0
    %253 = vmatpush2.bf16.msra.mxu0 0
    %254 = vmatprep.subr.bf16.mxu0 0
    %255 = vmatpush2.bf16.msra.mxu0 0
    %256 = vmatprep.subr.bf16.mxu0 0
    %257 = vmatpush2.bf16.msra.mxu0 0
    %258 = vmatprep.subr.bf16.mxu0 0
    %259 = vmatpush2.bf16.msra.mxu0 0
    %260 = vmatprep.mubr.bf16.mxu0 0
    %261 = vmatmul.mubr.bf16.gmra.mxu0 %v127
    %v262 = vpop.f32.mrf.mxu0
    %v263 = vadd.f32 0.0, %v262
    %v264 = vpop.f32.mrf.mxu0
    %v265 = vpop.f32.mrf.mxu0
    %v266 = vpop.f32.mrf.mxu0
    %267 = vdwg.mxu0
    %269 = vrot.lane.b32.xlu0 %v224, 96
    %v270 = vpop.permute.xlu0 %269
    %v272 = vsel %vm129, %v270, 0
    %274 = vmatprep.subr.bf16.mxu0 0
    %275 = vmatpush1.bf16.msra.mxu0 0
    %276 = vmatprep.subr.bf16.mxu0 0
    %277 = vmatpush1.bf16.msra.mxu0 0
    %278 = vmatprep.subr.bf16.mxu0 0
    %279 = vmatpush1.bf16.msra.mxu0 0
    %280 = vmatprep.subr.bf16.mxu0 0
    %281 = vmatpush1.bf16.msra.mxu0 0
    %282 = vmatprep.subr.bf16.mxu0 0
    %283 = vmatpush1.bf16.msra.mxu0 0
    %284 = vmatprep.subr.bf16.mxu0 0
    %285 = vmatpush1.bf16.msra.mxu0 0
    %286 = vmatprep.subr.bf16.mxu0 0
    %287 = vmatpush1.bf16.msra.mxu0 0
    %288 = vmatprep.subr.bf16.mxu0 0
    %289 = vmatpush1.bf16.msra.mxu0 %v272
    %290 = vmatprep.subr.bf16.mxu0 0
    %291 = vmatpush2.bf16.msra.mxu0 0
    %292 = vmatprep.subr.bf16.mxu0 0
    %293 = vmatpush2.bf16.msra.mxu0 0
    %294 = vmatprep.subr.bf16.mxu0 0
    %295 = vmatpush2.bf16.msra.mxu0 0
    %296 = vmatprep.subr.bf16.mxu0 0
    %297 = vmatpush2.bf16.msra.mxu0 0
    %298 = vmatprep.subr.bf16.mxu0 0
    %299 = vmatpush2.bf16.msra.mxu0 0
    %300 = vmatprep.subr.bf16.mxu0 0
    %301 = vmatpush2.bf16.msra.mxu0 0
    %302 = vmatprep.subr.bf16.mxu0 0
    %303 = vmatpush2.bf16.msra.mxu0 0
    %304 = vmatprep.subr.bf16.mxu0 0
    %305 = vmatpush2.bf16.msra.mxu0 0
    %306 = vmatprep.mubr.bf16.mxu0 0
    %307 = vmatmul.mubr.bf16.gmra.mxu0 %v177
    %v308 = vpop.f32.mrf.mxu0
    %v309 = vadd.f32 0.0, %v308
    %v310 = vpop.f32.mrf.mxu0
    %v311 = vpop.f32.mrf.mxu0
    %v312 = vpop.f32.mrf.mxu0
    %313 = vdwg.mxu0
    %v314 = vsub.f32 %v263, %v309
    %s315 = scalar_lea.vmem [#allocation8], 8
    %316 = vst.msk [vmem:[%s315] sm:$0xff] %vm77, %v314
    // Predicated region
    $region30: #{tpu_custom_call.1} parent=1 // pred_check
      _
    $region31: #{tpu_custom_call.1} parent=1 // pred_check_branch
      %318 = sbr.rel (0) target = $region33
    $region32: #{tpu_custom_call.1} parent=1 // pred_region
      %s320 = ssub.s32 256, 256
      %321 = vsyncadd [#allocation4], %s320
      %s322 = sshll.u32 [#allocation8], 4
      %s323 = int_to_ptr.vmem [resolvable:$true] %s322
      %328 = dma.vmem_to_hbm [thread:$0]  %s323, 256, %s4, [#allocation4], 128, 128, 8
    $region33: #{tpu_custom_call.1} parent=1 // pred_fallthru
      _
    // Predicated region
    $region34: #{tpu_custom_call.1} parent=1 // pred_check
      _
    $region35: #{tpu_custom_call.1} parent=1 // pred_check_branch
      %330 = sbr.rel (0) target = $region37
    $region36: #{tpu_custom_call.1} parent=1 // pred_region
      %331 = dma.done [#allocation4], 256
    $region37: #{tpu_custom_call.1} parent=1 // pred_fallthru
      _
    %332 = vsyncpa [#allocation3], 1
    %333 = vsyncpa [#allocation6], 1
    %334 = vsyncpa [#allocation4], 1

</llo_original>
